<compile_context>
chip_gen: v6e
topology: v6e:2x2x1
jax: 0.10.0
libtpu: 0.0.40
codegen_flags: <defaults>
</compile_context>

<pallas_src>
import functools

import jax
import jax.numpy as jnp
from jax.experimental import pallas as pl
from jax.experimental.pallas import tpu as pltpu


def _quantize(v, n_levels, rng):
    """Symmetric uniform quantization to n_levels with range rng (elementwise)."""
    inv = 1.0 / jnp.maximum(rng, 1e-12)
    q = jnp.clip(v * inv, -1.0, 1.0)
    return jnp.round(q * n_levels) / n_levels * rng


def _round_up(v, m):
    return (v + m - 1) // m * m


# ----------------------------- kernel A (fused) -----------------------------
# Calibrated path: matmul + bias + output quantization, one pass.
def _qnl_fused_kernel(rng_ref, x_ref, wt_ref, b_ref, o_ref, *, n_levels):
    y = jnp.dot(x_ref[...], wt_ref[...], preferred_element_type=jnp.float32)
    y = y + b_ref[...]                                   # bias broadcast (1, tn)
    o_ref[...] = _quantize(y, n_levels, rng_ref[0, 0])


# --------------------------- kernel B1 (matmul+max) --------------------------
# Uncalibrated path pass 1: matmul + bias, per-tile abs-max (masked to the real
# batch rows) written to a lane-dense (8,128) block so the grid stays parallel.
def _qnl_matmul_max_kernel(x_ref, wt_ref, b_ref, y_ref, tmax_ref, *,
                           valid_rows, tile_m):
    y = jnp.dot(x_ref[...], wt_ref[...], preferred_element_type=jnp.float32)
    y = y + b_ref[...]
    y_ref[...] = y

    i = pl.program_id(0)
    rows_left = valid_rows - i * tile_m                  # rows of this tile that are real
    row_ids = jax.lax.broadcasted_iota(jnp.int32, y.shape, 0)
    masked = jnp.where(row_ids < rows_left, jnp.abs(y), 0.0)
    tmax_ref[...] = jnp.full(tmax_ref.shape, jnp.max(masked), dtype=jnp.float32)


# --------------------------- kernel B2 (quantize y) --------------------------
def _quant_out_kernel(rng_ref, y_ref, o_ref, *, n_levels):
    o_ref[...] = _quantize(y_ref[...], n_levels, rng_ref[0, 0])


# --------------------------------- wrapper ----------------------------------
def qn_linear_forward(x, weight, bias, noise, n_levels, scale, input_range=None,
                      *, tm=256, tn=256, compute_dtype=jnp.bfloat16):
    """Pallas implementation of QNLinear.forward (eval mode).

    x:       (batch, in_features)
    weight:  (out_features, in_features)   (nn.Linear layout)
    bias:    (out_features,) or None
    noise:   (out_features, in_features) or None (== clear_noise)
    """
    M, K = x.shape
    Nout, K2 = weight.shape
    assert K == K2, "weight / input feature mismatch"

    # ---- one-time weight preprocessing (hoisted out of the kernel) ----------
    w = weight.astype(jnp.float32)
    wmax = jnp.max(jnp.abs(w))
    wq = _quantize(w, n_levels, wmax)
    if noise is not None:
        wq = wq + noise.astype(jnp.float32)
    # Fold `scale` into the effective weight: x @ ((wq+noise)*scale)^T == (x @ (wq+noise)^T) * scale
    weff_t = (wq * jnp.float32(scale)).T                 # (K, Nout)

    # ---- pad to TPU-friendly shapes -----------------------------------------
    Kp = _round_up(K, 128)
    Np = _round_up(Nout, 128)
    tm_eff = min(tm, _round_up(M, 8))
    tn_eff = min(tn, Np)
    Mp = _round_up(M, tm_eff)

    x_p = jnp.zeros((Mp, Kp), compute_dtype).at[:M, :K].set(x.astype(compute_dtype))
    w_p = jnp.zeros((Kp, Np), compute_dtype).at[:K, :Nout].set(weff_t.astype(compute_dtype))
    b_p = jnp.zeros((1, Np), jnp.float32)
    if bias is not None:
        b_p = b_p.at[0, :Nout].set(bias.astype(jnp.float32))

    gm, gn = Mp // tm_eff, Np // tn_eff
    grid = (gm, gn)
    x_spec = pl.BlockSpec((tm_eff, Kp), lambda i, j: (i, 0))
    w_spec = pl.BlockSpec((Kp, tn_eff), lambda i, j: (0, j))
    b_spec = pl.BlockSpec((1, tn_eff), lambda i, j: (0, j))
    o_spec = pl.BlockSpec((tm_eff, tn_eff), lambda i, j: (i, j))
    cparams = pltpu.CompilerParams(dimension_semantics=("parallel", "parallel"))

    calibrate = (input_range is None) or bool(jnp.all(input_range == 0.0))

    if not calibrate:
        # ---------------- fused path: matmul + bias + output quant ----------
        rng_val = jnp.asarray(input_range, jnp.float32).reshape(-1)[0].reshape(1, 1)
        out_p = pl.pallas_call(
            functools.partial(_qnl_fused_kernel, n_levels=n_levels),
            out_shape=jax.ShapeDtypeStruct((Mp, Np), jnp.float32),
            grid_spec=pl.GridSpec(
                grid=grid,
                in_specs=[
                    pl.BlockSpec(memory_space=pltpu.MemorySpace.SMEM),  # range scalar
                    x_spec, w_spec, b_spec,
                ],
                out_specs=o_spec),
            compiler_params=cparams,
        )(rng_val, x_p, w_p, b_p)
        return out_p[:M, :Nout]

    # ---------------- calibration path (input_range == 0) --------------------
    # Pass 1: matmul + bias + per-tile |y| max (lane-dense per-tile output keeps
    # the grid fully parallel; wrapper reduces to the global max).
    y_p, tile_max = pl.pallas_call(
        functools.partial(_qnl_matmul_max_kernel, valid_rows=M, tile_m=tm_eff),
        out_shape=(jax.ShapeDtypeStruct((Mp, Np), jnp.float32),
                   jax.ShapeDtypeStruct((gm * 8, gn * 128), jnp.float32)),
        grid_spec=pl.GridSpec(
            grid=grid,
            in_specs=[x_spec, w_spec, b_spec],
            out_specs=(o_spec, pl.BlockSpec((8, 128), lambda i, j: (i, j)))),
        compiler_params=cparams,
    )(x_p, w_p, b_p)

    rng_val = jnp.max(tile_max).reshape(1, 1).astype(jnp.float32)

    # Pass 2: elementwise output quantization, in place (aliased), fat row tiles.
    tq = min(512, Mp)
    out_p = pl.pallas_call(
        functools.partial(_quant_out_kernel, n_levels=n_levels),
        out_shape=jax.ShapeDtypeStruct((Mp, Np), jnp.float32),
        grid_spec=pl.GridSpec(
            grid=(pl.cdiv(Mp, tq),),
            in_specs=[
                pl.BlockSpec(memory_space=pltpu.MemorySpace.SMEM),      # range scalar
                pl.BlockSpec((tq, Np), lambda i: (i, 0)),
            ],
            out_specs=pl.BlockSpec((tq, Np), lambda i: (i, 0))),
        compiler_params=pltpu.CompilerParams(dimension_semantics=("parallel",)),
        input_output_aliases={1: 0},
    )(rng_val, y_p)
    return out_p[:M, :Nout]


# ----------------------------- pure-JAX reference ----------------------------
def _ref_forward(x, weight, bias, noise, n_levels, scale, input_range,
                 matmul_dtype=jnp.float32):
    w = weight.astype(jnp.float32)
    wmax = jnp.max(jnp.abs(w))
    wq = _quantize(w, n_levels, wmax)
    if noise is not None:
        wq = wq + noise.astype(jnp.float32)
    weff_t = (wq * jnp.float32(scale)).T          # scale folded, same as kernel
    y = jnp.dot(x.astype(matmul_dtype), weff_t.astype(matmul_dtype),
                preferred_element_type=jnp.float32)
    if bias is not None:
        y = y + bias.astype(jnp.float32)
    if input_range is None:
        rng = jnp.max(jnp.abs(y))
    else:
        r = jnp.asarray(input_range, jnp.float32).reshape(-1)[0]
        rng = jnp.where(r == 0.0, jnp.max(jnp.abs(y)), r)
    return _quantize(y, n_levels, rng)


if __name__ == "__main__":
    key = jax.random.PRNGKey(0)
    k_x, k_w, k_b, k_n = jax.random.split(key, 4)

    batch, in_features, out_features = 8, 32, 64
    N = 8                       # quantization levels parameter
    scale = 1.0                 # self.scale default
    bound = 1.0 / float(jnp.sqrt(in_features))

    x = jax.random.normal(k_x, (batch, in_features), dtype=jnp.float32)
    weight = jax.random.uniform(k_w, (out_features, in_features),
                                minval=-bound, maxval=bound, dtype=jnp.float32)
    bias = jax.random.uniform(k_b, (out_features,),
                              minval=-bound, maxval=bound, dtype=jnp.float32)

    # --- case 1: clear_noise(), uncalibrated input_range (==0), f32 matmul ----
    input_range0 = jnp.zeros((1,), jnp.float32)    # registered buffer default
    out1 = qn_linear_forward(x, weight, bias, None, N, scale, input_range0,
                             compute_dtype=jnp.float32)
    out1 = jax.block_until_ready(out1)
    ref1 = _ref_forward(x, weight, bias, None, N, scale, input_range0,
                        matmul_dtype=jnp.float32)
    assert out1.shape == (batch, out_features)
    assert jnp.allclose(out1, ref1, rtol=1e-5, atol=1e-5), "mismatch (calibration path)"

    # --- case 2: set_noise(), calibrated input_range, bf16 matmul (fused path) --
    dev_var = 0.05
    noise = jax.random.normal(k_n, weight.shape, jnp.float32) * dev_var * jnp.max(jnp.abs(weight))
    input_range1 = jnp.array([2.5], jnp.float32)
    out2 = qn_linear_forward(x, weight, bias, noise, N, scale, input_range1,
                             compute_dtype=jnp.bfloat16)
    out2 = jax.block_until_ready(out2)
    ref2 = _ref_forward(x, weight, bias, noise, N, scale, input_range1,
                        matmul_dtype=jnp.bfloat16)
    assert out2.shape == (batch, out_features)
    # Quantized outputs may differ by at most one quantization step from
    # accumulation-order differences between the MXU kernel and XLA.
    step = float(input_range1[0]) / N
    assert float(jnp.max(jnp.abs(out2 - ref2))) <= step + 1e-3, "mismatch (fused path)"

    print("KERNEL_OK")
</pallas_src>

<mosaic_0001>
module attributes {stable_mosaic.version = 11 : i64} {
  func.func @_qnl_matmul_max_kernel(%arg0: i32, %arg1: i32, %arg2: memref<8x128xf32, #tpu.memory_space<vmem>>, %arg3: memref<128x128xf32, #tpu.memory_space<vmem>>, %arg4: memref<1x128xf32, #tpu.memory_space<vmem>>, %arg5: memref<8x128xf32, #tpu.memory_space<vmem>>, %arg6: memref<8x128xf32, #tpu.memory_space<vmem>>) attributes {dimension_semantics = [#tpu.dimension_semantics<parallel>, #tpu.dimension_semantics<parallel>], iteration_bounds = array<i64: 1, 1>, scalar_prefetch = 0 : i64, scratch_operands = 0 : i64, tpu.core_type = #tpu.core_type<tc>, window_params = [{transform_indices = @transform_0, window_bounds = array<i64: 8, 128>}, {transform_indices = @transform_1, window_bounds = array<i64: 128, 128>}, {transform_indices = @transform_2, window_bounds = array<i64: 1, 128>}, {transform_indices = @transform_3, window_bounds = array<i64: 8, 128>}, {transform_indices = @transform_4, window_bounds = array<i64: 8, 128>}]} {
    %c0 = arith.constant 0 : index
    %c0_0 = arith.constant 0 : index
    %0 = vector.load %arg2[%c0, %c0_0] : memref<8x128xf32, #tpu.memory_space<vmem>>, vector<8x128xf32>
    %c0_1 = arith.constant 0 : index
    %c0_2 = arith.constant 0 : index
    %1 = vector.load %arg3[%c0_1, %c0_2] : memref<128x128xf32, #tpu.memory_space<vmem>>, vector<128x128xf32>
    %cst = arith.constant dense<0.000000e+00> : vector<8x128xf32>
    %2 = tpu.matmul %0, %1, %cst {dimension_numbers = #tpu.dot_dimension_numbers<[1], [0], [0], [1], [0, 0, 1, 1], [], []>} : vector<8x128xf32>, vector<128x128xf32>, vector<8x128xf32> -> vector<8x128xf32>
    %c0_3 = arith.constant 0 : index
    %c0_4 = arith.constant 0 : index
    %3 = vector.load %arg4[%c0_3, %c0_4] : memref<1x128xf32, #tpu.memory_space<vmem>>, vector<1x128xf32>
    %4 = vector.broadcast %3 : vector<1x128xf32> to vector<8x128xf32>
    %5 = arith.addf %2, %4 : vector<8x128xf32>
    %c0_5 = arith.constant 0 : index
    %c0_6 = arith.constant 0 : index
    %6 = vector.load %arg5[%c0_5, %c0_6] : memref<8x128xf32, #tpu.memory_space<vmem>>, vector<8x128xf32>
    tpu.vector_store %arg5[%c0_5, %c0_6], %5 {strides = array<i32>} : memref<8x128xf32, #tpu.memory_space<vmem>>, vector<8x128xf32>,
    %c8_i32 = arith.constant 8 : i32
    %7 = arith.muli %arg0, %c8_i32 : i32
    %c8_i32_7 = arith.constant 8 : i32
    %8 = arith.subi %c8_i32_7, %7 : i32
    %9 = tpu.iota {dimensions = array<i32: 0>} : vector<8x128xi32>
    %10 = vector.broadcast %8 : i32 to vector<8x128xi32>
    %11 = arith.cmpi slt, %9, %10 : vector<8x128xi32>
    %12 = math.absf %5 : vector<8x128xf32>
    %cst_8 = arith.constant 0.000000e+00 : f32
    %13 = vector.broadcast %cst_8 : f32 to vector<8x128xf32>
    %14 = arith.select %11, %12, %13 : vector<8x128xi1>, vector<8x128xf32>
    %15 = vector.shape_cast %14 : vector<8x128xf32> to vector<1x8x128xf32>
    %cst_9 = arith.constant dense<0xFF800000> : vector<1xf32>
    %16 = vector.multi_reduction <maximumf>, %15, %cst_9 [1, 2] : vector<1x8x128xf32> to vector<1xf32>
    %17 = vector.shape_cast %16 : vector<1xf32> to vector<1x1x1xf32>
    %18 = vector.extract %17[0, 0, 0] : f32 from vector<1x1x1xf32>
    %19 = vector.broadcast %18 : f32 to vector<8x128xf32>
    %c0_10 = arith.constant 0 : index
    %c0_11 = arith.constant 0 : index
    %20 = vector.load %arg6[%c0_10, %c0_11] : memref<8x128xf32, #tpu.memory_space<vmem>>, vector<8x128xf32>
    tpu.vector_store %arg6[%c0_10, %c0_11], %19 {strides = array<i32>} : memref<8x128xf32, #tpu.memory_space<vmem>>, vector<8x128xf32>,
    return
  }
  func.func @transform_0(%arg0: i32, %arg1: i32) -> (i32, i32) {
    %c0_i32 = arith.constant 0 : i32
    %c0_i32_0 = arith.constant 0 : i32
    return %arg0, %c0_i32 : i32, i32
  }
  func.func @transform_1(%arg0: i32, %arg1: i32) -> (i32, i32) {
    %c0_i32 = arith.constant 0 : i32
    %c0_i32_0 = arith.constant 0 : i32
    return %c0_i32, %arg1 : i32, i32
  }
  func.func @transform_2(%arg0: i32, %arg1: i32) -> (i32, i32) {
    %c0_i32 = arith.constant 0 : i32
    %c0_i32_0 = arith.constant 0 : i32
    return %c0_i32, %arg1 : i32, i32
  }
  func.func @transform_3(%arg0: i32, %arg1: i32) -> (i32, i32) {
    %c0_i32 = arith.constant 0 : i32
    return %arg0, %arg1 : i32, i32
  }
  func.func @transform_4(%arg0: i32, %arg1: i32) -> (i32, i32) {
    %c0_i32 = arith.constant 0 : i32
    return %arg0, %arg1 : i32, i32
  }
}

</mosaic_0001>

<llo_original>
// kernel: tpu_custom_call.1
$region0: #{tpu_custom_call.1}
  #allocation0 [shape = 'u32[]', space=smem, size = 0x4, offset = 0x4, fixed_abs, tag = 'smem constant byte address 0x4 - core index']
  #allocation1 [shape = 'u32[144,128]{1,0:T(1,128)}', space=vmem, size = 0x12000, scoped, tag = 'internal scratch']
  %s0 = inlined_call_operand.hbm [shape: f32[8,128], index: 0, kind: input, shape index: {}]
  %s1 = inlined_call_operand.hbm [shape: f32[128,128], index: 1, kind: input, shape index: {}]
  %s2 = inlined_call_operand.vmem [shape: f32[1,128], index: 2, kind: input, shape index: {}]
  %s3 = inlined_call_operand.hbm [shape: f32[8,128], index: 3, kind: output, shape index: {0}]
  %s4 = inlined_call_operand.hbm [shape: f32[8,128], index: 4, kind: output, shape index: {1}]
  %5 = xla_tuple %s3, %s4
  %s6 = sld [smem:[#allocation0]]
  $region38: #{tpu_custom_call.1} parent=0
    _
  %s8 = ssub.s32 1, %s6
  %s9 = scalar_select 0, %s8, %s6
  $region1: #{tpu_custom_call.1} parent=0
    #allocation2 [shape = 'u8[4096]{0}', space=vmem, size = 0x1000, scoped, tag = 'input window, operand 0, single buffered']
    #allocation3 [shape = 's32[1]{0}', space=sflag, size = 0x4, scoped, tag = 'scoped memory for tpu_custom_call.1']
    #allocation4 [shape = 's32[1]{0}', space=sflag, size = 0x4, scoped, tag = 'scoped memory for tpu_custom_call.1']
    #allocation5 [shape = 'u8[65536]{0}', space=vmem, size = 0x10000, scoped, tag = 'input window, operand 1, single buffered']
    #allocation6 [shape = 's32[1]{0}', space=sflag, size = 0x4, scoped, tag = 'scoped memory for tpu_custom_call.1']
    #allocation7 [shape = 'u8[4096]{0}', space=vmem, size = 0x1000, scoped, tag = 'output window, operand 0, single buffered']
    #allocation8 [shape = 'u8[4096]{0}', space=vmem, size = 0x1000, scoped, tag = 'output window, operand 1, single buffered']
    #allocation9 [shape = 's32[1]{0}', space=sflag, size = 0x4, scoped, tag = 'scoped memory for tpu_custom_call.1']
    %10 = vsyncpa [#allocation3], 0
    %11 = vsyncpa [#allocation6], 0
    %12 = vsyncpa [#allocation4], 0
    %13 = vsyncpa [#allocation9], 0
    // Predicated region
    $region2: #{tpu_custom_call.1} parent=1 // pred_check
      _
    $region3: #{tpu_custom_call.1} parent=1 // pred_check_branch
      %15 = sbr.rel (0) target = $region5
    $region4: #{tpu_custom_call.1} parent=1 // pred_region
      %s17 = ssub.s32 128, 128
      %18 = vsyncadd [#allocation3], %s17
      %s20 = sshll.u32 [#allocation2], 4
      %s21 = int_to_ptr.vmem [resolvable:$true] %s20
      %23 = dma.hbm_to_vmem [thread:$0]  %s0, 128, %s21, [#allocation3]
    $region5: #{tpu_custom_call.1} parent=1 // pred_fallthru
      _
    // Predicated region
    $region6: #{tpu_custom_call.1} parent=1 // pred_check
      _
    $region7: #{tpu_custom_call.1} parent=1 // pred_check_branch
      %25 = sbr.rel (0) target = $region9
    $region8: #{tpu_custom_call.1} parent=1 // pred_region
      %s27 = ssub.s32 2048, 2048
      %28 = vsyncadd [#allocation6], %s27
      %s29 = sshll.u32 [#allocation5], 4
      %s30 = int_to_ptr.vmem [resolvable:$true] %s29
      %35 = dma.hbm_to_vmem [thread:$0]  %s1, 2048, %s30, [#allocation6], 128, 128, 8
    $region9: #{tpu_custom_call.1} parent=1 // pred_fallthru
      _
    // Predicated region
    $region10: #{tpu_custom_call.1} parent=1 // pred_check
      _
    $region11: #{tpu_custom_call.1} parent=1 // pred_check_branch
      %37 = sbr.rel (0) target = $region13
    $region12: #{tpu_custom_call.1} parent=1 // pred_region
      _
    $region13: #{tpu_custom_call.1} parent=1 // pred_fallthru
      _
    // Predicated region
    $region14: #{tpu_custom_call.1} parent=1 // pred_check
      _
    $region15: #{tpu_custom_call.1} parent=1 // pred_check_branch
      %39 = sbr.rel (0) target = $region17
    $region16: #{tpu_custom_call.1} parent=1 // pred_region
      %40 = dma.done [#allocation3], 128
    $region17: #{tpu_custom_call.1} parent=1 // pred_fallthru
      _
    // Predicated region
    $region18: #{tpu_custom_call.1} parent=1 // pred_check
      _
    $region19: #{tpu_custom_call.1} parent=1 // pred_check_branch
      %42 = sbr.rel (0) target = $region21
    $region20: #{tpu_custom_call.1} parent=1 // pred_region
      %43 = dma.done [#allocation6], 2048
    $region21: #{tpu_custom_call.1} parent=1 // pred_fallthru
      _
    %v44 = vld [vmem:[#allocation2] sm:$0xff]
    %v45 = vld [vmem:[#allocation5] sm:$0xff]
    %v46 = vld [vmem:[#allocation5 + $0x8] sm:$0xff]
    %v47 = vld [vmem:[#allocation5 + $0x10] sm:$0xff]
    %v48 = vld [vmem:[#allocation5 + $0x18] sm:$0xff]
    %v49 = vld [vmem:[#allocation5 + $0x20] sm:$0xff]
    %v50 = vld [vmem:[#allocation5 + $0x28] sm:$0xff]
    %v51 = vld [vmem:[#allocation5 + $0x30] sm:$0xff]
    %v52 = vld [vmem:[#allocation5 + $0x38] sm:$0xff]
    %v53 = vld [vmem:[#allocation5 + $0x40] sm:$0xff]
    %v54 = vld [vmem:[#allocation5 + $0x48] sm:$0xff]
    %v55 = vld [vmem:[#allocation5 + $0x50] sm:$0xff]
    %v56 = vld [vmem:[#allocation5 + $0x58] sm:$0xff]
    %v57 = vld [vmem:[#allocation5 + $0x60] sm:$0xff]
    %v58 = vld [vmem:[#allocation5 + $0x68] sm:$0xff]
    %v59 = vld [vmem:[#allocation5 + $0x70] sm:$0xff]
    %v60 = vld [vmem:[#allocation5 + $0x78] sm:$0xff]
    %v61 = vld [vmem:[%s2] sm:$0x1]
    %v63 = vlaneseq
    %v64 = vshrl.u32 %v63, 7
    %v65 = vsub.s32 0, %v64
    %v66 = vrot.slane %v61, %v65
    %68 = vmatprep.subr.mxu0 0.0
    %69 = vmatpush1.msra.mxu0 %v60
    %70 = vmatprep.subr.mxu0 0.0
    %71 = vmatpush1.msra.mxu0 %v59
    %72 = vmatprep.subr.mxu0 0.0
    %73 = vmatpush1.msra.mxu0 %v58
    %74 = vmatprep.subr.mxu0 0.0
    %75 = vmatpush1.msra.mxu0 %v57
    %76 = vmatprep.subr.mxu0 0.0
    %77 = vmatpush1.msra.mxu0 %v56
    %78 = vmatprep.subr.mxu0 0.0
    %79 = vmatpush1.msra.mxu0 %v55
    %80 = vmatprep.subr.mxu0 0.0
    %81 = vmatpush1.msra.mxu0 %v54
    %82 = vmatprep.subr.mxu0 0.0
    %83 = vmatpush1.msra.mxu0 %v53
    %84 = vmatprep.subr.mxu0 0.0
    %85 = vmatpush1.msra.mxu0 %v52
    %86 = vmatprep.subr.mxu0 0.0
    %87 = vmatpush1.msra.mxu0 %v51
    %88 = vmatprep.subr.mxu0 0.0
    %89 = vmatpush1.msra.mxu0 %v50
    %90 = vmatprep.subr.mxu0 0.0
    %91 = vmatpush1.msra.mxu0 %v49
    %92 = vmatprep.subr.mxu0 0.0
    %93 = vmatpush1.msra.mxu0 %v48
    %94 = vmatprep.subr.mxu0 0.0
    %95 = vmatpush1.msra.mxu0 %v47
    %96 = vmatprep.subr.mxu0 0.0
    %97 = vmatpush1.msra.mxu0 %v46
    %98 = vmatprep.subr.mxu0 0.0
    %99 = vmatpush1.msra.mxu0 %v45
    %100 = vmatprep.subr.mxu0 0.0
    %101 = vmatpush2.msra.mxu0 0.0
    %102 = vmatprep.subr.mxu0 0.0
    %103 = vmatpush2.msra.mxu0 0.0
    %104 = vmatprep.subr.mxu0 0.0
    %105 = vmatpush2.msra.mxu0 0.0
    %106 = vmatprep.subr.mxu0 0.0
    %107 = vmatpush2.msra.mxu0 0.0
    %108 = vmatprep.subr.mxu0 0.0
    %109 = vmatpush2.msra.mxu0 0.0
    %110 = vmatprep.subr.mxu0 0.0
    %111 = vmatpush2.msra.mxu0 0.0
    %112 = vmatprep.subr.mxu0 0.0
    %113 = vmatpush2.msra.mxu0 0.0
    %114 = vmatprep.subr.mxu0 0.0
    %115 = vmatpush2.msra.mxu0 0.0
    %116 = vmatprep.subr.mxu0 0.0
    %117 = vmatpush2.msra.mxu0 0.0
    %118 = vmatprep.subr.mxu0 0.0
    %119 = vmatpush2.msra.mxu0 0.0
    %120 = vmatprep.subr.mxu0 0.0
    %121 = vmatpush2.msra.mxu0 0.0
    %122 = vmatprep.subr.mxu0 0.0
    %123 = vmatpush2.msra.mxu0 0.0
    %124 = vmatprep.subr.mxu0 0.0
    %125 = vmatpush2.msra.mxu0 0.0
    %126 = vmatprep.subr.mxu0 0.0
    %127 = vmatpush2.msra.mxu0 0.0
    %128 = vmatprep.subr.mxu0 0.0
    %129 = vmatpush2.msra.mxu0 0.0
    %130 = vmatprep.subr.mxu0 0.0
    %131 = vmatpush2.msra.mxu0 0.0
    %132 = vmatprep.mubr.f32.mxu0 0.0
    %133 = vmatmul.mubr.f32.gmra.mxu0 %v44
    %v134 = vpop.f32.mrf.mxu0
    %v135 = vadd.f32 %v66, %v134
    %v136 = vpop.f32.mrf.mxu0
    %137 = vdwg.mxu0
    %138 = vst [vmem:[#allocation7] sm:$0xff] %v135
    %s139 = smul.u32 0, 8
    %s140 = ssub.s32 8, %s139
    %v141 = vlaneseq
    %v142 = vshrl.u32 %v141, 7
    %v143 = vstv %s140
    %vm144 = vcmp.lt.s32.totalorder %v142, %v143
    %v145 = vand.u32 2147483647, %v135
    %v146 = vsel %vm144, %v145, 0.0
    %147 = vmax.xlane.f32.xlu0 %v146
    %v148 = vpop.xlane.xlu0 %147
    %v149 = vrot.slane %v148, 4
    %v150 = vmax.f32 %v148, %v149
    %v151 = vrot.slane %v150, 2
    %v152 = vmax.f32 %v150, %v151
    %v153 = vrot.slane %v152, 1
    %v154 = vmax.f32 %v152, %v153
    %s155 = vtos %v154
    %v156 = vstv %s155
    %157 = vst [vmem:[#allocation8] sm:$0xff] %v156
    // Predicated region
    $region22: #{tpu_custom_call.1} parent=1 // pred_check
      _
    $region23: #{tpu_custom_call.1} parent=1 // pred_check_branch
      %159 = sbr.rel (0) target = $region25
    $region24: #{tpu_custom_call.1} parent=1 // pred_region
      %s161 = ssub.s32 128, 128
      %162 = vsyncadd [#allocation4], %s161
      %s164 = sshll.u32 [#allocation7], 4
      %s165 = int_to_ptr.vmem [resolvable:$true] %s164
      %167 = dma.vmem_to_hbm [thread:$0]  %s165, 128, %s3, [#allocation4]
    $region25: #{tpu_custom_call.1} parent=1 // pred_fallthru
      _
    // Predicated region
    $region26: #{tpu_custom_call.1} parent=1 // pred_check
      _
    $region27: #{tpu_custom_call.1} parent=1 // pred_check_branch
      %169 = sbr.rel (0) target = $region29
    $region28: #{tpu_custom_call.1} parent=1 // pred_region
      %s171 = ssub.s32 128, 128
      %172 = vsyncadd [#allocation9], %s171
      %s174 = sshll.u32 [#allocation8], 4
      %s175 = int_to_ptr.vmem [resolvable:$true] %s174
      %177 = dma.vmem_to_hbm [thread:$0]  %s175, 128, %s4, [#allocation9]
    $region29: #{tpu_custom_call.1} parent=1 // pred_fallthru
      _
    // Predicated region
    $region30: #{tpu_custom_call.1} parent=1 // pred_check
      _
    $region31: #{tpu_custom_call.1} parent=1 // pred_check_branch
      %179 = sbr.rel (0) target = $region33
    $region32: #{tpu_custom_call.1} parent=1 // pred_region
      %180 = dma.done [#allocation4], 128
    $region33: #{tpu_custom_call.1} parent=1 // pred_fallthru
      _
    // Predicated region
    $region34: #{tpu_custom_call.1} parent=1 // pred_check
      _
    $region35: #{tpu_custom_call.1} parent=1 // pred_check_branch
      %182 = sbr.rel (0) target = $region37
    $region36: #{tpu_custom_call.1} parent=1 // pred_region
      %183 = dma.done [#allocation9], 128
    $region37: #{tpu_custom_call.1} parent=1 // pred_fallthru
      _
    %184 = vsyncpa [#allocation3], 1
    %185 = vsyncpa [#allocation6], 1
    %186 = vsyncpa [#allocation4], 1
    %187 = vsyncpa [#allocation9], 1

</llo_original>
